<compile_context>
chip_gen: v6e
topology: v6e:2x2x1
jax: 0.10.0
libtpu: 0.0.40
codegen_flags: <defaults>
</compile_context>

<pallas_src>
import math

import jax
import jax.numpy as jnp
from jax import lax
from jax.experimental import pallas as pl
from jax.experimental.pallas import tpu as pltpu


def _round_up(x, m):
    return ((x + m - 1) // m) * m


def _cdiv(a, b):
    return -(-a // b)


def _vmem_capacity_bytes():
    """Physical VMEM of the current TPU generation (safe fallback: 64 MiB / v7x)."""
    try:
        info = pltpu.get_tpu_info()
        cap = getattr(info, "vmem_capacity_bytes", None)
        if cap:
            return int(cap)
    except Exception:
        pass
    return 64 << 20


def _plan(batch, in_pad, hid_pad, a_pad, num_mid):
    """Choose param dtype, batch tile, padded batch and a safe VMEM limit."""
    vmem_cap = _vmem_capacity_bytes()
    budget = int(vmem_cap * 0.75)
    # v5e/v6e (128 MiB VMEM) can afford bigger batch tiles than v7x (64 MiB).
    tb_max = 1024 if vmem_cap > (80 << 20) else 512

    def pbytes(itemsize):
        n = (in_pad + 1) * hid_pad
        n += num_mid * (hid_pad + 1) * hid_pad
        n += (hid_pad + 1) * a_pad
        return n * itemsize

    # Resident params are double-buffered by the default pipeline -> count 2x.
    param_dtype = jnp.float32
    if 2 * pbytes(4) > (budget * 3) // 5:
        param_dtype = jnp.bfloat16          # halves resident VMEM + HBM weight traffic
    p_resident = 2 * pbytes(jnp.dtype(param_dtype).itemsize)
    # TODO(synk): if 2x bf16 params still exceed the budget, add a hidden-dim grid
    # axis with an accumulator instead of keeping every layer VMEM-resident.

    def est(tb):
        io_tiles = 2 * tb * (in_pad + a_pad) * 4              # double-buffered x / mu tiles
        live = 3 * tb * max(in_pad, hid_pad, a_pad) * 4       # live f32 activations
        return p_resident + io_tiles + live

    batch8 = _round_up(max(batch, 1), 8)
    num_tiles = max(1, _cdiv(batch8, tb_max))
    if num_tiles == 1 and batch8 >= 16:
        num_tiles = 2                       # >=2 parallel steps -> both v7x TensorCores work
    tb = _round_up(_cdiv(batch8, num_tiles), 8)
    while tb > 8 and est(tb) > budget:
        tb = max(8, (tb // 2) // 8 * 8)
    batch_pad = _round_up(batch8, tb)

    vmem_limit = int(min(max(est(tb) * 3 // 2, 16 << 20) + (2 << 20), vmem_cap))
    return param_dtype, tb, batch_pad, vmem_limit


def _make_actor_kernel(num_mid):
    """Kernel over one (tb, *) batch tile; all params are VMEM-resident.

    refs: x, w0, b0, [w_mid_stack, b_mid_stack,] w_mu, b_mu, mu_out
    """
    unroll = True if num_mid <= 4 else False

    def kernel(*refs):
        x_ref, w0_ref, b0_ref = refs[0], refs[1], refs[2]
        if num_mid > 0:
            wmid_ref, bmid_ref = refs[3], refs[4]
            wmu_ref, bmu_ref, mu_ref = refs[5], refs[6], refs[7]
        else:
            wmu_ref, bmu_ref, mu_ref = refs[3], refs[4], refs[5]

        def mm(h, w):
            # bf16 fallback path: cast activations to the weight dtype so the MXU
            # runs at native rate; accumulate in f32 either way.
            return jnp.dot(h.astype(w.dtype), w, preferred_element_type=jnp.float32)

        h = jnp.maximum(
            mm(x_ref[...], w0_ref[...]) + b0_ref[...].astype(jnp.float32), 0.0)

        if num_mid > 0:
            def body(i, h):
                w = wmid_ref[i]                      # (hid_pad, hid_pad)
                b = bmid_ref[i]                      # (1, hid_pad)
                return jnp.maximum(mm(h, w) + b.astype(jnp.float32), 0.0)
            h = lax.fori_loop(0, num_mid, body, h, unroll=unroll)

        mu = jnp.tanh(mm(h, wmu_ref[...]) + bmu_ref[...].astype(jnp.float32))
        mu_ref[...] = mu.astype(mu_ref.dtype)        # lane-dense store (a_pad % 128 == 0)

    return kernel


def init_actor_params(key, layer_num, s_dim, a_dim, hidden_dim=256):
    """Mirrors the PyTorch module: nn.Linear default init, sigma = -0.5 * ones."""
    hidden = []
    dims = [s_dim] + [hidden_dim] * (layer_num - 1)
    for i in range(len(dims) - 1):
        fan_in, fan_out = dims[i], dims[i + 1]
        key, kw, kb = jax.random.split(key, 3)
        bound = 1.0 / math.sqrt(fan_in)
        w = jax.random.uniform(kw, (fan_in, fan_out), jnp.float32, -bound, bound)
        b = jax.random.uniform(kb, (1, fan_out), jnp.float32, -bound, bound)
        hidden.append((w, b))
    key, kw, kb = jax.random.split(key, 3)
    bound = 1.0 / math.sqrt(hidden_dim)
    w_mu = jax.random.uniform(kw, (hidden_dim, a_dim), jnp.float32, -bound, bound)
    b_mu = jax.random.uniform(kb, (1, a_dim), jnp.float32, -bound, bound)
    sigma = -0.5 * jnp.ones((1, a_dim), jnp.float32)
    return {"hidden": hidden, "mu": (w_mu, b_mu), "sigma": sigma}


def _pad2(x, rows, cols):
    r, c = x.shape
    if r == rows and c == cols:
        return x
    return jnp.pad(x, ((0, rows - r), (0, cols - c)))


def _const_index_map(ndim):
    return lambda i: (0,) * ndim


@jax.jit
def actor_prob2_forward(params, s):
    """Mirrors ActorProb2.forward: flatten s, MLP+ReLU, mu=tanh(head), sigma=softplus(param)."""
    batch = s.shape[0]
    x = s.reshape(batch, -1).astype(jnp.float32)
    s_feat = x.shape[1]

    hidden_params = params["hidden"]
    w_mu, b_mu = params["mu"]
    sigma_param = params["sigma"]
    hidden_dim = w_mu.shape[0]
    a_dim = w_mu.shape[1]
    num_mid = len(hidden_params) - 1

    # Lane-align every feature dim to 128 (zero padding is exact: ReLU(0)=0
    # propagates zeros; padded mu columns are sliced off).
    in_pad = _round_up(s_feat, 128)
    hid_pad = _round_up(hidden_dim, 128)
    a_pad = _round_up(a_dim, 128)

    param_dtype, tb, batch_pad, vmem_limit = _plan(
        batch, in_pad, hid_pad, a_pad, num_mid)

    w0, b0 = hidden_params[0]
    w0_p = _pad2(w0.astype(param_dtype), in_pad, hid_pad)
    b0_p = _pad2(b0.astype(param_dtype).reshape(1, -1), 1, hid_pad)
    param_arrays = [w0_p, b0_p]
    if num_mid > 0:
        wmid_p = jnp.stack(
            [_pad2(w.astype(param_dtype), hid_pad, hid_pad) for w, _ in hidden_params[1:]])
        bmid_p = jnp.stack(
            [_pad2(b.astype(param_dtype).reshape(1, -1), 1, hid_pad) for _, b in hidden_params[1:]])
        param_arrays += [wmid_p, bmid_p]
    wmu_p = _pad2(w_mu.astype(param_dtype), hid_pad, a_pad)
    bmu_p = _pad2(b_mu.astype(param_dtype).reshape(1, -1), 1, a_pad)
    param_arrays += [wmu_p, bmu_p]
    params_bytes = sum(int(math.prod(p.shape)) * p.dtype.itemsize for p in param_arrays)

    # Only pad x when actually needed (avoids an extra HBM copy for aligned inputs).
    if batch_pad != batch or in_pad != s_feat:
        x_p = jnp.pad(x, ((0, batch_pad - batch), (0, in_pad - s_feat)))
    else:
        x_p = x

    grid = (batch_pad // tb,)
    in_specs = [pl.BlockSpec((tb, in_pad), lambda i: (i, 0))]
    for p in param_arrays:
        # Constant index_map: params stay VMEM-resident across all grid steps.
        in_specs.append(pl.BlockSpec(p.shape, _const_index_map(p.ndim)))
    out_specs = pl.BlockSpec((tb, a_pad), lambda i: (i, 0))
    out_shape = jax.ShapeDtypeStruct((batch_pad, a_pad), jnp.float32)

    flops = 2 * batch_pad * (in_pad * hid_pad
                             + num_mid * hid_pad * hid_pad
                             + hid_pad * a_pad)
    transcendentals = batch_pad * a_pad                    # tanh
    bytes_accessed = batch_pad * (in_pad + a_pad) * 4 + params_bytes

    mu_p = pl.pallas_call(
        _make_actor_kernel(num_mid),
        grid=grid,
        in_specs=in_specs,
        out_specs=out_specs,
        out_shape=out_shape,
        compiler_params=pltpu.CompilerParams(
            dimension_semantics=("parallel",),
            vmem_limit_bytes=vmem_limit),
        cost_estimate=pl.CostEstimate(
            flops=flops,
            transcendentals=transcendentals,
            bytes_accessed=bytes_accessed),
    )(x_p, *param_arrays)

    mu = mu_p[:batch, :a_dim]

    # sigma = softplus(sigma_param) is batch/x-independent: compute once in the
    # wrapper (stable softplus) and broadcast -- no kernel work / HBM writes.
    sp = jnp.maximum(sigma_param, 0.0) + jnp.log1p(jnp.exp(-jnp.abs(sigma_param)))
    sigma = jnp.broadcast_to(sp.reshape(1, a_dim), (batch, a_dim))
    return mu, sigma


def _reference_forward(params, s):
    """Pure-JAX reference mirroring the PyTorch module."""
    x = s.reshape(s.shape[0], -1).astype(jnp.float32)
    h = x
    for w, b in params["hidden"]:
        h = jnp.maximum(jnp.dot(h, w, preferred_element_type=jnp.float32) + b, 0.0)
    w_mu, b_mu = params["mu"]
    mu = jnp.tanh(jnp.dot(h, w_mu, preferred_element_type=jnp.float32) + b_mu)
    sp = params["sigma"]
    sigma = jnp.maximum(sp, 0.0) + jnp.log1p(jnp.exp(-jnp.abs(sp)))
    sigma = jnp.broadcast_to(sigma, mu.shape)
    return mu, sigma


if __name__ == "__main__":
    key = jax.random.PRNGKey(0)
    k_s, k_p = jax.random.split(key)

    layer_num = 3
    batch = 2
    s_dim = 16           # state arrives as (2, 4, 4) and is flattened to 16
    a_dim = 4
    hidden_dim = 32

    s = jax.random.normal(k_s, (batch, 4, 4), jnp.float32)
    params = init_actor_params(k_p, layer_num, s_dim, a_dim, hidden_dim)

    mu, sigma = actor_prob2_forward(params, s)
    mu = jax.block_until_ready(mu)
    sigma = jax.block_until_ready(sigma)

    mu_ref, sigma_ref = _reference_forward(params, s)
    assert mu.shape == (batch, a_dim), mu.shape
    assert sigma.shape == (batch, a_dim), sigma.shape
    assert jnp.allclose(mu, mu_ref, atol=1e-5, rtol=1e-5), (mu, mu_ref)
    assert jnp.allclose(sigma, sigma_ref, atol=1e-5, rtol=1e-5), (sigma, sigma_ref)

    print("KERNEL_OK")
</pallas_src>

<mosaic_0001>
module attributes {stable_mosaic.version = 11 : i64} {
  func.func @kernel(%arg0: i32, %arg1: memref<8x128xf32, #tpu.memory_space<vmem>>, %arg2: memref<128x128xf32, #tpu.memory_space<vmem>>, %arg3: memref<1x128xf32, #tpu.memory_space<vmem>>, %arg4: memref<1x128x128xf32, #tpu.memory_space<vmem>>, %arg5: memref<1x1x128xf32, #tpu.memory_space<vmem>>, %arg6: memref<128x128xf32, #tpu.memory_space<vmem>>, %arg7: memref<1x128xf32, #tpu.memory_space<vmem>>, %arg8: memref<8x128xf32, #tpu.memory_space<vmem>>) attributes {dimension_semantics = [#tpu.dimension_semantics<parallel>], iteration_bounds = array<i64: 1>, scalar_prefetch = 0 : i64, scratch_operands = 0 : i64, tpu.core_type = #tpu.core_type<tc>, window_params = [{transform_indices = @transform_0, window_bounds = array<i64: 8, 128>}, {pipeline_mode = #tpu.pipeline_mode<synchronous>, transform_indices = @transform_1, window_bounds = array<i64: 128, 128>}, {pipeline_mode = #tpu.pipeline_mode<synchronous>, transform_indices = @transform_2, window_bounds = array<i64: 1, 128>}, {pipeline_mode = #tpu.pipeline_mode<synchronous>, transform_indices = @transform_3, window_bounds = array<i64: 1, 128, 128>}, {pipeline_mode = #tpu.pipeline_mode<synchronous>, transform_indices = @transform_4, window_bounds = array<i64: 1, 1, 128>}, {pipeline_mode = #tpu.pipeline_mode<synchronous>, transform_indices = @transform_5, window_bounds = array<i64: 128, 128>}, {pipeline_mode = #tpu.pipeline_mode<synchronous>, transform_indices = @transform_6, window_bounds = array<i64: 1, 128>}, {transform_indices = @transform_7, window_bounds = array<i64: 8, 128>}]} {
    %c0 = arith.constant 0 : index
    %c0_0 = arith.constant 0 : index
    %0 = vector.load %arg1[%c0, %c0_0] : memref<8x128xf32, #tpu.memory_space<vmem>>, vector<8x128xf32>
    %c0_1 = arith.constant 0 : index
    %c0_2 = arith.constant 0 : index
    %1 = vector.load %arg2[%c0_1, %c0_2] : memref<128x128xf32, #tpu.memory_space<vmem>>, vector<128x128xf32>
    %cst = arith.constant dense<0.000000e+00> : vector<8x128xf32>
    %2 = tpu.matmul %0, %1, %cst {dimension_numbers = #tpu.dot_dimension_numbers<[1], [0], [0], [1], [0, 0, 1, 1], [], []>} : vector<8x128xf32>, vector<128x128xf32>, vector<8x128xf32> -> vector<8x128xf32>
    %c0_3 = arith.constant 0 : index
    %c0_4 = arith.constant 0 : index
    %3 = vector.load %arg3[%c0_3, %c0_4] : memref<1x128xf32, #tpu.memory_space<vmem>>, vector<1x128xf32>
    %4 = vector.broadcast %3 : vector<1x128xf32> to vector<8x128xf32>
    %5 = arith.addf %2, %4 : vector<8x128xf32>
    %cst_5 = arith.constant 0.000000e+00 : f32
    %6 = vector.broadcast %cst_5 : f32 to vector<8x128xf32>
    %7 = arith.maximumf %5, %6 : vector<8x128xf32>
    %c0_i32 = arith.constant 0 : i32
    %8 = arith.index_cast %c0_i32 : i32 to index
    %c0_6 = arith.constant 0 : index
    %c0_7 = arith.constant 0 : index
    %9 = vector.load %arg4[%8, %c0_6, %c0_7] : memref<1x128x128xf32, #tpu.memory_space<vmem>>, vector<1x128x128xf32>
    %10 = vector.shape_cast %9 : vector<1x128x128xf32> to vector<128x128xf32>
    %11 = arith.index_cast %c0_i32 : i32 to index
    %c0_8 = arith.constant 0 : index
    %c0_9 = arith.constant 0 : index
    %12 = vector.load %arg5[%11, %c0_8, %c0_9] : memref<1x1x128xf32, #tpu.memory_space<vmem>>, vector<1x1x128xf32>
    %13 = vector.shape_cast %12 : vector<1x1x128xf32> to vector<1x128xf32>
    %cst_10 = arith.constant dense<0.000000e+00> : vector<8x128xf32>
    %14 = tpu.matmul %7, %10, %cst_10 {dimension_numbers = #tpu.dot_dimension_numbers<[1], [0], [0], [1], [0, 0, 1, 1], [], []>} : vector<8x128xf32>, vector<128x128xf32>, vector<8x128xf32> -> vector<8x128xf32>
    %15 = vector.broadcast %13 : vector<1x128xf32> to vector<8x128xf32>
    %16 = arith.addf %14, %15 : vector<8x128xf32>
    %cst_11 = arith.constant 0.000000e+00 : f32
    %17 = vector.broadcast %cst_11 : f32 to vector<8x128xf32>
    %18 = arith.maximumf %16, %17 : vector<8x128xf32>
    %c1_i32 = arith.constant 1 : i32
    %c0_12 = arith.constant 0 : index
    %c0_13 = arith.constant 0 : index
    %19 = vector.load %arg6[%c0_12, %c0_13] : memref<128x128xf32, #tpu.memory_space<vmem>>, vector<128x128xf32>
    %cst_14 = arith.constant dense<0.000000e+00> : vector<8x128xf32>
    %20 = tpu.matmul %18, %19, %cst_14 {dimension_numbers = #tpu.dot_dimension_numbers<[1], [0], [0], [1], [0, 0, 1, 1], [], []>} : vector<8x128xf32>, vector<128x128xf32>, vector<8x128xf32> -> vector<8x128xf32>
    %c0_15 = arith.constant 0 : index
    %c0_16 = arith.constant 0 : index
    %21 = vector.load %arg7[%c0_15, %c0_16] : memref<1x128xf32, #tpu.memory_space<vmem>>, vector<1x128xf32>
    %22 = vector.broadcast %21 : vector<1x128xf32> to vector<8x128xf32>
    %23 = arith.addf %20, %22 : vector<8x128xf32>
    %24 = math.tanh %23 : vector<8x128xf32>
    %c0_17 = arith.constant 0 : index
    %c0_18 = arith.constant 0 : index
    %25 = vector.load %arg8[%c0_17, %c0_18] : memref<8x128xf32, #tpu.memory_space<vmem>>, vector<8x128xf32>
    tpu.vector_store %arg8[%c0_17, %c0_18], %24 {strides = array<i32>} : memref<8x128xf32, #tpu.memory_space<vmem>>, vector<8x128xf32>,
    return
  }
  func.func @transform_0(%arg0: i32) -> (i32, i32) {
    %c0_i32 = arith.constant 0 : i32
    %c0_i32_0 = arith.constant 0 : i32
    return %arg0, %c0_i32 : i32, i32
  }
  func.func @transform_1(%arg0: i32) -> (i32, i32) {
    %c0_i32 = arith.constant 0 : i32
    %c0_i32_0 = arith.constant 0 : i32
    %c0_i32_1 = arith.constant 0 : i32
    return %c0_i32, %c0_i32_0 : i32, i32
  }
  func.func @transform_2(%arg0: i32) -> (i32, i32) {
    %c0_i32 = arith.constant 0 : i32
    %c0_i32_0 = arith.constant 0 : i32
    %c0_i32_1 = arith.constant 0 : i32
    return %c0_i32, %c0_i32_0 : i32, i32
  }
  func.func @transform_3(%arg0: i32) -> (i32, i32, i32) {
    %c0_i32 = arith.constant 0 : i32
    %c0_i32_0 = arith.constant 0 : i32
    %c0_i32_1 = arith.constant 0 : i32
    %c0_i32_2 = arith.constant 0 : i32
    return %c0_i32, %c0_i32_0, %c0_i32_1 : i32, i32, i32
  }
  func.func @transform_4(%arg0: i32) -> (i32, i32, i32) {
    %c0_i32 = arith.constant 0 : i32
    %c0_i32_0 = arith.constant 0 : i32
    %c0_i32_1 = arith.constant 0 : i32
    %c0_i32_2 = arith.constant 0 : i32
    return %c0_i32, %c0_i32_0, %c0_i32_1 : i32, i32, i32
  }
  func.func @transform_5(%arg0: i32) -> (i32, i32) {
    %c0_i32 = arith.constant 0 : i32
    %c0_i32_0 = arith.constant 0 : i32
    %c0_i32_1 = arith.constant 0 : i32
    return %c0_i32, %c0_i32_0 : i32, i32
  }
  func.func @transform_6(%arg0: i32) -> (i32, i32) {
    %c0_i32 = arith.constant 0 : i32
    %c0_i32_0 = arith.constant 0 : i32
    %c0_i32_1 = arith.constant 0 : i32
    return %c0_i32, %c0_i32_0 : i32, i32
  }
  func.func @transform_7(%arg0: i32) -> (i32, i32) {
    %c0_i32 = arith.constant 0 : i32
    %c0_i32_0 = arith.constant 0 : i32
    return %arg0, %c0_i32 : i32, i32
  }
}

</mosaic_0001>

<llo_original>
// kernel: actor_prob2_forward.1
$region0: #{actor_prob2_forward.1}
  #allocation0 [shape = 'u32[]', space=smem, size = 0x4, offset = 0x4, fixed_abs, tag = 'smem constant byte address 0x4 - core index']
  #allocation1 [shape = 'u32[144,128]{1,0:T(1,128)}', space=vmem, size = 0x12000, scoped, tag = 'internal scratch']
  %s0 = inlined_call_operand.vmem [shape: f32[8,128], index: 0, kind: input, shape index: {}]
  %s1 = inlined_call_operand.vmem [shape: f32[128,128], index: 1, kind: input, shape index: {}]
  %s2 = inlined_call_operand.vmem [shape: f32[1,128], index: 2, kind: input, shape index: {}]
  %s3 = inlined_call_operand.vmem [shape: f32[1,128,128], index: 3, kind: input, shape index: {}]
  %s4 = inlined_call_operand.vmem [shape: f32[1,1,128], index: 4, kind: input, shape index: {}]
  %s5 = inlined_call_operand.vmem [shape: f32[128,128], index: 5, kind: input, shape index: {}]
  %s6 = inlined_call_operand.vmem [shape: f32[1,128], index: 6, kind: input, shape index: {}]
  %s7 = inlined_call_operand.vmem [shape: f32[8,128], index: 7, kind: output, shape index: {}]
  %s8 = sld [smem:[#allocation0]]
  $region38: #{actor_prob2_forward.1} parent=0
    _
  %s10 = ssub.s32 1, %s8
  %s11 = scalar_select 0, %s10, %s8
  // Predicated region
  $region2: #{actor_prob2_forward.1} parent=0 // pred_check
    _
  $region3: #{actor_prob2_forward.1} parent=0 // pred_check_branch
    %13 = sbr.rel (0) target = $region5
  $region4: #{actor_prob2_forward.1} parent=0 // pred_region
    _
  $region5: #{actor_prob2_forward.1} parent=0 // pred_fallthru
    _
  // Predicated region
  $region6: #{actor_prob2_forward.1} parent=0 // pred_check
    _
  $region7: #{actor_prob2_forward.1} parent=0 // pred_check_branch
    %15 = sbr.rel (0) target = $region9
  $region8: #{actor_prob2_forward.1} parent=0 // pred_region
    _
  $region9: #{actor_prob2_forward.1} parent=0 // pred_fallthru
    _
  // Predicated region
  $region10: #{actor_prob2_forward.1} parent=0 // pred_check
    _
  $region11: #{actor_prob2_forward.1} parent=0 // pred_check_branch
    %17 = sbr.rel (0) target = $region13
  $region12: #{actor_prob2_forward.1} parent=0 // pred_region
    _
  $region13: #{actor_prob2_forward.1} parent=0 // pred_fallthru
    _
  // Predicated region
  $region14: #{actor_prob2_forward.1} parent=0 // pred_check
    _
  $region15: #{actor_prob2_forward.1} parent=0 // pred_check_branch
    %19 = sbr.rel (0) target = $region17
  $region16: #{actor_prob2_forward.1} parent=0 // pred_region
    _
  $region17: #{actor_prob2_forward.1} parent=0 // pred_fallthru
    _
  // Predicated region
  $region18: #{actor_prob2_forward.1} parent=0 // pred_check
    _
  $region19: #{actor_prob2_forward.1} parent=0 // pred_check_branch
    %21 = sbr.rel (0) target = $region21
  $region20: #{actor_prob2_forward.1} parent=0 // pred_region
    _
  $region21: #{actor_prob2_forward.1} parent=0 // pred_fallthru
    _
  // Predicated region
  $region22: #{actor_prob2_forward.1} parent=0 // pred_check
    _
  $region23: #{actor_prob2_forward.1} parent=0 // pred_check_branch
    %23 = sbr.rel (0) target = $region25
  $region24: #{actor_prob2_forward.1} parent=0 // pred_region
    _
  $region25: #{actor_prob2_forward.1} parent=0 // pred_fallthru
    _
  // Predicated region
  $region26: #{actor_prob2_forward.1} parent=0 // pred_check
    _
  $region27: #{actor_prob2_forward.1} parent=0 // pred_check_branch
    %25 = sbr.rel (0) target = $region29
  $region28: #{actor_prob2_forward.1} parent=0 // pred_region
    _
  $region29: #{actor_prob2_forward.1} parent=0 // pred_fallthru
    _
  %v26 = vld [vmem:[%s0] sm:$0xff]
  %v27 = vld [vmem:[%s1] sm:$0xff]
  %v28 = vld [vmem:[%s1 + $0x8] sm:$0xff]
  %v29 = vld [vmem:[%s1 + $0x10] sm:$0xff]
  %v30 = vld [vmem:[%s1 + $0x18] sm:$0xff]
  %v31 = vld [vmem:[%s1 + $0x20] sm:$0xff]
  %v32 = vld [vmem:[%s1 + $0x28] sm:$0xff]
  %v33 = vld [vmem:[%s1 + $0x30] sm:$0xff]
  %v34 = vld [vmem:[%s1 + $0x38] sm:$0xff]
  %v35 = vld [vmem:[%s1 + $0x40] sm:$0xff]
  %v36 = vld [vmem:[%s1 + $0x48] sm:$0xff]
  %v37 = vld [vmem:[%s1 + $0x50] sm:$0xff]
  %v38 = vld [vmem:[%s1 + $0x58] sm:$0xff]
  %v39 = vld [vmem:[%s1 + $0x60] sm:$0xff]
  %v40 = vld [vmem:[%s1 + $0x68] sm:$0xff]
  %v41 = vld [vmem:[%s1 + $0x70] sm:$0xff]
  %v42 = vld [vmem:[%s1 + $0x78] sm:$0xff]
  %v43 = vld [vmem:[%s2] sm:$0x1]
  %v45 = vlaneseq
  %v46 = vshrl.u32 %v45, 7
  %v47 = vsub.s32 0, %v46
  %v48 = vrot.slane %v43, %v47
  %50 = vmatprep.subr.mxu0 0.0
  %51 = vmatpush1.msra.mxu0 %v42
  %52 = vmatprep.subr.mxu0 0.0
  %53 = vmatpush1.msra.mxu0 %v41
  %54 = vmatprep.subr.mxu0 0.0
  %55 = vmatpush1.msra.mxu0 %v40
  %56 = vmatprep.subr.mxu0 0.0
  %57 = vmatpush1.msra.mxu0 %v39
  %58 = vmatprep.subr.mxu0 0.0
  %59 = vmatpush1.msra.mxu0 %v38
  %60 = vmatprep.subr.mxu0 0.0
  %61 = vmatpush1.msra.mxu0 %v37
  %62 = vmatprep.subr.mxu0 0.0
  %63 = vmatpush1.msra.mxu0 %v36
  %64 = vmatprep.subr.mxu0 0.0
  %65 = vmatpush1.msra.mxu0 %v35
  %66 = vmatprep.subr.mxu0 0.0
  %67 = vmatpush1.msra.mxu0 %v34
  %68 = vmatprep.subr.mxu0 0.0
  %69 = vmatpush1.msra.mxu0 %v33
  %70 = vmatprep.subr.mxu0 0.0
  %71 = vmatpush1.msra.mxu0 %v32
  %72 = vmatprep.subr.mxu0 0.0
  %73 = vmatpush1.msra.mxu0 %v31
  %74 = vmatprep.subr.mxu0 0.0
  %75 = vmatpush1.msra.mxu0 %v30
  %76 = vmatprep.subr.mxu0 0.0
  %77 = vmatpush1.msra.mxu0 %v29
  %78 = vmatprep.subr.mxu0 0.0
  %79 = vmatpush1.msra.mxu0 %v28
  %80 = vmatprep.subr.mxu0 0.0
  %81 = vmatpush1.msra.mxu0 %v27
  %82 = vmatprep.subr.mxu0 0.0
  %83 = vmatpush2.msra.mxu0 0.0
  %84 = vmatprep.subr.mxu0 0.0
  %85 = vmatpush2.msra.mxu0 0.0
  %86 = vmatprep.subr.mxu0 0.0
  %87 = vmatpush2.msra.mxu0 0.0
  %88 = vmatprep.subr.mxu0 0.0
  %89 = vmatpush2.msra.mxu0 0.0
  %90 = vmatprep.subr.mxu0 0.0
  %91 = vmatpush2.msra.mxu0 0.0
  %92 = vmatprep.subr.mxu0 0.0
  %93 = vmatpush2.msra.mxu0 0.0
  %94 = vmatprep.subr.mxu0 0.0
  %95 = vmatpush2.msra.mxu0 0.0
  %96 = vmatprep.subr.mxu0 0.0
  %97 = vmatpush2.msra.mxu0 0.0
  %98 = vmatprep.subr.mxu0 0.0
  %99 = vmatpush2.msra.mxu0 0.0
  %100 = vmatprep.subr.mxu0 0.0
  %101 = vmatpush2.msra.mxu0 0.0
  %102 = vmatprep.subr.mxu0 0.0
  %103 = vmatpush2.msra.mxu0 0.0
  %104 = vmatprep.subr.mxu0 0.0
  %105 = vmatpush2.msra.mxu0 0.0
  %106 = vmatprep.subr.mxu0 0.0
  %107 = vmatpush2.msra.mxu0 0.0
  %108 = vmatprep.subr.mxu0 0.0
  %109 = vmatpush2.msra.mxu0 0.0
  %110 = vmatprep.subr.mxu0 0.0
  %111 = vmatpush2.msra.mxu0 0.0
  %112 = vmatprep.subr.mxu0 0.0
  %113 = vmatpush2.msra.mxu0 0.0
  %114 = vmatprep.mubr.f32.mxu0 0.0
  %115 = vmatmul.mubr.f32.gmra.mxu0 %v26
  %v116 = vpop.f32.mrf.mxu0
  %v117 = vadd.f32 %v48, %v116
  %v118 = vpop.f32.mrf.mxu0
  %119 = vdwg.mxu0
  %v120 = vmax.f32 %v117, 0.0
  %v121 = vld [vmem:[%s3] sm:$0xff]
  %v122 = vld [vmem:[%s3 + $0x8] sm:$0xff]
  %v123 = vld [vmem:[%s3 + $0x10] sm:$0xff]
  %v124 = vld [vmem:[%s3 + $0x18] sm:$0xff]
  %v125 = vld [vmem:[%s3 + $0x20] sm:$0xff]
  %v126 = vld [vmem:[%s3 + $0x28] sm:$0xff]
  %v127 = vld [vmem:[%s3 + $0x30] sm:$0xff]
  %v128 = vld [vmem:[%s3 + $0x38] sm:$0xff]
  %v129 = vld [vmem:[%s3 + $0x40] sm:$0xff]
  %v130 = vld [vmem:[%s3 + $0x48] sm:$0xff]
  %v131 = vld [vmem:[%s3 + $0x50] sm:$0xff]
  %v132 = vld [vmem:[%s3 + $0x58] sm:$0xff]
  %v133 = vld [vmem:[%s3 + $0x60] sm:$0xff]
  %v134 = vld [vmem:[%s3 + $0x68] sm:$0xff]
  %v135 = vld [vmem:[%s3 + $0x70] sm:$0xff]
  %v136 = vld [vmem:[%s3 + $0x78] sm:$0xff]
  %v137 = vld [vmem:[%s4] sm:$0x1]
  %v139 = vlaneseq
  %v140 = vshrl.u32 %v139, 7
  %v141 = vsub.s32 0, %v140
  %v142 = vrot.slane %v137, %v141
  %144 = vmatprep.subr.mxu0 0.0
  %145 = vmatpush1.msra.mxu0 %v136
  %146 = vmatprep.subr.mxu0 0.0
  %147 = vmatpush1.msra.mxu0 %v135
  %148 = vmatprep.subr.mxu0 0.0
  %149 = vmatpush1.msra.mxu0 %v134
  %150 = vmatprep.subr.mxu0 0.0
  %151 = vmatpush1.msra.mxu0 %v133
  %152 = vmatprep.subr.mxu0 0.0
  %153 = vmatpush1.msra.mxu0 %v132
  %154 = vmatprep.subr.mxu0 0.0
  %155 = vmatpush1.msra.mxu0 %v131
  %156 = vmatprep.subr.mxu0 0.0
  %157 = vmatpush1.msra.mxu0 %v130
  %158 = vmatprep.subr.mxu0 0.0
  %159 = vmatpush1.msra.mxu0 %v129
  %160 = vmatprep.subr.mxu0 0.0
  %161 = vmatpush1.msra.mxu0 %v128
  %162 = vmatprep.subr.mxu0 0.0
  %163 = vmatpush1.msra.mxu0 %v127
  %164 = vmatprep.subr.mxu0 0.0
  %165 = vmatpush1.msra.mxu0 %v126
  %166 = vmatprep.subr.mxu0 0.0
  %167 = vmatpush1.msra.mxu0 %v125
  %168 = vmatprep.subr.mxu0 0.0
  %169 = vmatpush1.msra.mxu0 %v124
  %170 = vmatprep.subr.mxu0 0.0
  %171 = vmatpush1.msra.mxu0 %v123
  %172 = vmatprep.subr.mxu0 0.0
  %173 = vmatpush1.msra.mxu0 %v122
  %174 = vmatprep.subr.mxu0 0.0
  %175 = vmatpush1.msra.mxu0 %v121
  %176 = vmatprep.subr.mxu0 0.0
  %177 = vmatpush2.msra.mxu0 0.0
  %178 = vmatprep.subr.mxu0 0.0
  %179 = vmatpush2.msra.mxu0 0.0
  %180 = vmatprep.subr.mxu0 0.0
  %181 = vmatpush2.msra.mxu0 0.0
  %182 = vmatprep.subr.mxu0 0.0
  %183 = vmatpush2.msra.mxu0 0.0
  %184 = vmatprep.subr.mxu0 0.0
  %185 = vmatpush2.msra.mxu0 0.0
  %186 = vmatprep.subr.mxu0 0.0
  %187 = vmatpush2.msra.mxu0 0.0
  %188 = vmatprep.subr.mxu0 0.0
  %189 = vmatpush2.msra.mxu0 0.0
  %190 = vmatprep.subr.mxu0 0.0
  %191 = vmatpush2.msra.mxu0 0.0
  %192 = vmatprep.subr.mxu0 0.0
  %193 = vmatpush2.msra.mxu0 0.0
  %194 = vmatprep.subr.mxu0 0.0
  %195 = vmatpush2.msra.mxu0 0.0
  %196 = vmatprep.subr.mxu0 0.0
  %197 = vmatpush2.msra.mxu0 0.0
  %198 = vmatprep.subr.mxu0 0.0
  %199 = vmatpush2.msra.mxu0 0.0
  %200 = vmatprep.subr.mxu0 0.0
  %201 = vmatpush2.msra.mxu0 0.0
  %202 = vmatprep.subr.mxu0 0.0
  %203 = vmatpush2.msra.mxu0 0.0
  %204 = vmatprep.subr.mxu0 0.0
  %205 = vmatpush2.msra.mxu0 0.0
  %206 = vmatprep.subr.mxu0 0.0
  %207 = vmatpush2.msra.mxu0 0.0
  %208 = vmatprep.mubr.f32.mxu0 0.0
  %209 = vmatmul.mubr.f32.gmra.mxu0 %v120
  %v210 = vpop.f32.mrf.mxu0
  %v211 = vadd.f32 %v142, %v210
  %v212 = vpop.f32.mrf.mxu0
  %213 = vdwg.mxu0
  %v214 = vmax.f32 %v211, 0.0
  %v215 = vld [vmem:[%s5] sm:$0xff]
  %v216 = vld [vmem:[%s5 + $0x8] sm:$0xff]
  %v217 = vld [vmem:[%s5 + $0x10] sm:$0xff]
  %v218 = vld [vmem:[%s5 + $0x18] sm:$0xff]
  %v219 = vld [vmem:[%s5 + $0x20] sm:$0xff]
  %v220 = vld [vmem:[%s5 + $0x28] sm:$0xff]
  %v221 = vld [vmem:[%s5 + $0x30] sm:$0xff]
  %v222 = vld [vmem:[%s5 + $0x38] sm:$0xff]
  %v223 = vld [vmem:[%s5 + $0x40] sm:$0xff]
  %v224 = vld [vmem:[%s5 + $0x48] sm:$0xff]
  %v225 = vld [vmem:[%s5 + $0x50] sm:$0xff]
  %v226 = vld [vmem:[%s5 + $0x58] sm:$0xff]
  %v227 = vld [vmem:[%s5 + $0x60] sm:$0xff]
  %v228 = vld [vmem:[%s5 + $0x68] sm:$0xff]
  %v229 = vld [vmem:[%s5 + $0x70] sm:$0xff]
  %v230 = vld [vmem:[%s5 + $0x78] sm:$0xff]
  %v231 = vld [vmem:[%s6] sm:$0x1]
  %v233 = vlaneseq
  %v234 = vshrl.u32 %v233, 7
  %v235 = vsub.s32 0, %v234
  %v236 = vrot.slane %v231, %v235
  %238 = vmatprep.subr.mxu0 0.0
  %239 = vmatpush1.msra.mxu0 %v230
  %240 = vmatprep.subr.mxu0 0.0
  %241 = vmatpush1.msra.mxu0 %v229
  %242 = vmatprep.subr.mxu0 0.0
  %243 = vmatpush1.msra.mxu0 %v228
  %244 = vmatprep.subr.mxu0 0.0
  %245 = vmatpush1.msra.mxu0 %v227
  %246 = vmatprep.subr.mxu0 0.0
  %247 = vmatpush1.msra.mxu0 %v226
  %248 = vmatprep.subr.mxu0 0.0
  %249 = vmatpush1.msra.mxu0 %v225
  %250 = vmatprep.subr.mxu0 0.0
  %251 = vmatpush1.msra.mxu0 %v224
  %252 = vmatprep.subr.mxu0 0.0
  %253 = vmatpush1.msra.mxu0 %v223
  %254 = vmatprep.subr.mxu0 0.0
  %255 = vmatpush1.msra.mxu0 %v222
  %256 = vmatprep.subr.mxu0 0.0
  %257 = vmatpush1.msra.mxu0 %v221
  %258 = vmatprep.subr.mxu0 0.0
  %259 = vmatpush1.msra.mxu0 %v220
  %260 = vmatprep.subr.mxu0 0.0
  %261 = vmatpush1.msra.mxu0 %v219
  %262 = vmatprep.subr.mxu0 0.0
  %263 = vmatpush1.msra.mxu0 %v218
  %264 = vmatprep.subr.mxu0 0.0
  %265 = vmatpush1.msra.mxu0 %v217
  %266 = vmatprep.subr.mxu0 0.0
  %267 = vmatpush1.msra.mxu0 %v216
  %268 = vmatprep.subr.mxu0 0.0
  %269 = vmatpush1.msra.mxu0 %v215
  %270 = vmatprep.subr.mxu0 0.0
  %271 = vmatpush2.msra.mxu0 0.0
  %272 = vmatprep.subr.mxu0 0.0
  %273 = vmatpush2.msra.mxu0 0.0
  %274 = vmatprep.subr.mxu0 0.0
  %275 = vmatpush2.msra.mxu0 0.0
  %276 = vmatprep.subr.mxu0 0.0
  %277 = vmatpush2.msra.mxu0 0.0
  %278 = vmatprep.subr.mxu0 0.0
  %279 = vmatpush2.msra.mxu0 0.0
  %280 = vmatprep.subr.mxu0 0.0
  %281 = vmatpush2.msra.mxu0 0.0
  %282 = vmatprep.subr.mxu0 0.0
  %283 = vmatpush2.msra.mxu0 0.0
  %284 = vmatprep.subr.mxu0 0.0
  %285 = vmatpush2.msra.mxu0 0.0
  %286 = vmatprep.subr.mxu0 0.0
  %287 = vmatpush2.msra.mxu0 0.0
  %288 = vmatprep.subr.mxu0 0.0
  %289 = vmatpush2.msra.mxu0 0.0
  %290 = vmatprep.subr.mxu0 0.0
  %291 = vmatpush2.msra.mxu0 0.0
  %292 = vmatprep.subr.mxu0 0.0
  %293 = vmatpush2.msra.mxu0 0.0
  %294 = vmatprep.subr.mxu0 0.0
  %295 = vmatpush2.msra.mxu0 0.0
  %296 = vmatprep.subr.mxu0 0.0
  %297 = vmatpush2.msra.mxu0 0.0
  %298 = vmatprep.subr.mxu0 0.0
  %299 = vmatpush2.msra.mxu0 0.0
  %300 = vmatprep.subr.mxu0 0.0
  %301 = vmatpush2.msra.mxu0 0.0
  %302 = vmatprep.mubr.f32.mxu0 0.0
  %303 = vmatmul.mubr.f32.gmra.mxu0 %v214
  %v304 = vpop.f32.mrf.mxu0
  %v305 = vadd.f32 %v236, %v304
  %v306 = vpop.f32.mrf.mxu0
  %307 = vdwg.mxu0
  %v308 = vtanh.pop %v305
  %309 = vst [vmem:[%s7] sm:$0xff] %v308
  // Predicated region
  $region30: #{actor_prob2_forward.1} parent=0 // pred_check
    _
  $region31: #{actor_prob2_forward.1} parent=0 // pred_check_branch
    %311 = sbr.rel (0) target = $region33
  $region32: #{actor_prob2_forward.1} parent=0 // pred_region
    _
  $region33: #{actor_prob2_forward.1} parent=0 // pred_fallthru
    _
  // Predicated region
  $region34: #{actor_prob2_forward.1} parent=0 // pred_check
    _
  $region35: #{actor_prob2_forward.1} parent=0 // pred_check_branch
    %313 = sbr.rel (0) target = $region37
  $region36: #{actor_prob2_forward.1} parent=0 // pred_region
    _
  $region37: #{actor_prob2_forward.1} parent=0 // pred_fallthru
    _

</llo_original>
